<compile_context>
chip_gen: v7x
topology: tpu7x:2x2x1
jax: 0.10.0
libtpu: 0.0.40
codegen_flags: <defaults>
</compile_context>

<pallas_src>
import functools
import math

import jax
import jax.numpy as jnp
from jax import lax
from jax.experimental import pallas as pl
from jax.experimental.pallas import tpu as pltpu


# ----------------------------- small helpers --------------------------------
def _mm(a, b):
  """a[..., K] @ b[K, N] on the MXU with f32 accumulation."""
  return lax.dot_general(a, b, (((a.ndim - 1,), (0,)), ((), ())),
                         preferred_element_type=jnp.float32)


def _mm_t(a, b):
  """a[M, K] contracted with b[N, K] over the minor dim -> [M, N] (q.k^T pattern)."""
  return lax.dot_general(a, b, (((1,), (1,)), ((), ())),
                         preferred_element_type=jnp.float32)


def _softmax_last(x):
  x = x - jnp.max(x, axis=-1, keepdims=True)
  e = jnp.exp(x)
  return e / jnp.sum(e, axis=-1, keepdims=True)


def _log_softmax_last(x):
  x = x - jnp.max(x, axis=-1, keepdims=True)
  return x - jnp.log(jnp.sum(jnp.exp(x), axis=-1, keepdims=True))


def _round_up(x, m):
  return ((x + m - 1) // m) * m


def _tpu_vmem_capacity():
  try:
    return int(pltpu.get_tpu_info().vmem_capacity_bytes)
  except Exception:
    return 64 * 1024 * 1024     # conservative default (v7x per-TensorCore)


# ------------------------------ eval kernel ----------------------------------
def pointer_generator_eval_kernel(
    dec_ref, enc_ref, mask_ref, srcid_ref,
    wq_ref, bq_ref, wk_ref, bk_ref,
    out_ref, kcache_sc, attn_acc_sc, copy_src_sc,
    *, num_heads, head_dim, v_tile):
  """Eval: copy gate = softmax over a size-1 axis = 1.0 exactly, so only the
  attention probabilities (q, k, scores, softmax, head-average) are live."""
  t_idx = pl.program_id(1)
  v_idx = pl.program_id(2)
  scale = 1.0 / math.sqrt(head_dim)

  # ---- heavy per-(batch, T-tile) work: first V step only, cached in VMEM ----
  @pl.when(v_idx == 0)
  def _():
    # K projections depend only on the encoder block: compute once per batch
    # (t == 0) and reuse across T-tiles (t grid axis is "arbitrary").
    @pl.when(t_idx == 0)
    def _():
      enc = enc_ref[0]                                              # [S, E] bf16
      def fill_k(h, carry):
        kcache_sc[h] = (_mm(enc, wk_ref[h]) + bk_ref[h]).astype(jnp.bfloat16)
        return carry
      lax.fori_loop(0, num_heads, fill_k, 0)

    dec = dec_ref[0]                                                # [tT, E] bf16
    neg = (1.0 - mask_ref[0]) * (-1e30)                             # [1, S] add-mask
    attn_acc_sc[...] = jnp.zeros_like(attn_acc_sc)

    # Rolled loop over heads (bounded live ranges); per-head probs summed in f32.
    def head_body(h, carry):
      qh = (_mm(dec, wq_ref[h]) + bq_ref[h]).astype(jnp.bfloat16)   # [tT, hd]
      scores = _mm_t(qh, kcache_sc[h]) * scale + neg                # [tT, S] f32
      attn_acc_sc[...] += _softmax_last(scores)
      return carry
    lax.fori_loop(0, num_heads, head_body, 0)

    # copy_probs == 1.0 exactly -> gated copy_source_probs == head average.
    # Stored bf16 so the per-V-tile scatter matmul runs with bf16 operands.
    copy_src_sc[...] = (attn_acc_sc[...] * (1.0 / num_heads)).astype(jnp.bfloat16)

  # ---- per V-tile: scatter_add over vocab as a bf16 one-hot matmul (f32 acc) ----
  ids = srcid_ref[0] - v_idx * v_tile                               # [1, S] shifted
  base = lax.broadcasted_iota(jnp.int32, (v_tile, ids.shape[1]), 0)
  onehot_t = (base == ids).astype(jnp.bfloat16)                     # [tV, S] 0/1
  # Minor-minor contraction (same canonical q.k^T pattern as the scores).
  out_ref[0] = _mm_t(copy_src_sc[...], onehot_t)                    # [tT, tV] f32


# ------------------------------ train kernel ---------------------------------
def pointer_generator_train_kernel(
    dec_ref, ontoid_ref, w1_ref, b1_ref, w2_ref, b2_ref,
    out_ref, onto_sc, *, v_tile):
  """Train: copy gate = log_softmax over a size-1 axis = 0.0 exactly, so the copy
  branch is identically zero and the ontology gate (1 - 0) == 1: only the generator
  MLP and the ontology scatter are live."""
  v_idx = pl.program_id(2)

  @pl.when(v_idx == 0)
  def _():
    dec = dec_ref[0]                                                # [tT, E] bf16
    # TODO(synk): Dropout(p=0.3) between ReLU and the output Linear is treated as
    # identity here (no in-kernel RNG).
    h1 = jnp.maximum(_mm(dec, w1_ref[...]) + b1_ref[...], 0.0)
    onto_logits = _mm(h1.astype(jnp.bfloat16), w2_ref[...]) + b2_ref[...]
    onto_sc[...] = _log_softmax_last(onto_logits)                   # gate == 1

  # per V-tile ontology scatter (K = n_onto is small; keep f32 log-prob fidelity)
  ids = ontoid_ref[...] - v_idx * v_tile                            # [1, n_onto]
  base = lax.broadcasted_iota(jnp.int32, (v_tile, ids.shape[1]), 0)
  onehot_t = (base == ids).astype(jnp.float32)                      # [tV, n_onto]
  out_ref[0] = _mm_t(onto_sc[...], onehot_t)                        # [tT, tV] f32


# -------------------------------- wrapper ------------------------------------
def pointer_generator_forward(source_input_ids, encoder_hidden_states,
                              encoder_attn_mask, decoder_hidden_states,
                              params, ontology_vocab_ids, *,
                              vocab_size, num_heads, train=False):
  B, S, E = encoder_hidden_states.shape
  _, T, _ = decoder_hidden_states.shape
  assert E % num_heads == 0
  hd = E // num_heads
  n_onto = int(ontology_vocab_ids.shape[0])

  # --- tiling: lane-dense padded output; per-generation V tile (review). ---
  vmem_cap = _tpu_vmem_capacity()
  tV_target = 1024 if vmem_cap >= (96 << 20) else 512   # 128 MiB parts vs v7x 64 MiB
  tV = min(tV_target, _round_up(vocab_size, 128))
  v_pad = _round_up(vocab_size, tV)
  n_v = v_pad // tV
  tT = T if T <= 128 else 128
  assert T % tT == 0, "TODO(synk): pad T when it is not a multiple of 128"
  n_t = T // tT

  bf16 = jnp.bfloat16
  # Cast activations to bf16 in the wrapper (halves DMA bytes + VMEM blocks).
  dec_bf = decoder_hidden_states.astype(bf16)

  def rep(arr):
    nd = arr.ndim
    return pl.BlockSpec(arr.shape, lambda b, t, v, _nd=nd: (0,) * _nd)

  out_shape = jax.ShapeDtypeStruct((B, T, v_pad), jnp.float32)
  out_spec = pl.BlockSpec((1, tT, tV), lambda b, t, v: (b, t, v))
  dec_spec = pl.BlockSpec((1, tT, E), lambda b, t, v: (b, t, 0))

  if not train:
    enc_bf = encoder_hidden_states.astype(bf16)
    mask3 = encoder_attn_mask.reshape(B, 1, S).astype(jnp.float32)
    srcid3 = source_input_ids.reshape(B, 1, S).astype(jnp.int32)    # lane-dense ids
    # Only q/k projections are live in eval (copy gate == 1 kills v/out/copy-head/MLP).
    wq_h = params["wq"].reshape(E, num_heads, hd).transpose(1, 0, 2).astype(bf16)
    wk_h = params["wk"].reshape(E, num_heads, hd).transpose(1, 0, 2).astype(bf16)
    bq_h = params["bq"].reshape(1, num_heads, hd).transpose(1, 0, 2)
    bk_h = params["bk"].reshape(1, num_heads, hd).transpose(1, 0, 2)
    weights = (wq_h, bq_h, wk_h, bk_h)
    inputs = (dec_bf, enc_bf, mask3, srcid3) + weights
    in_specs = [dec_spec,
                pl.BlockSpec((1, S, E), lambda b, t, v: (b, 0, 0)),
                pl.BlockSpec((1, 1, S), lambda b, t, v: (b, 0, 0)),
                pl.BlockSpec((1, 1, S), lambda b, t, v: (b, 0, 0))] + \
               [rep(w) for w in weights]
    scratch_shapes = [pltpu.VMEM((num_heads, S, hd), bf16),   # K cache (per batch)
                      pltpu.VMEM((tT, S), jnp.float32),       # head-summed probs
                      pltpu.VMEM((tT, S), bf16)]              # bf16 scatter LHS
    kernel = functools.partial(pointer_generator_eval_kernel,
                               num_heads=num_heads, head_dim=hd, v_tile=tV)
    # t must stay "arbitrary": the K cache is filled at t == 0 of each batch.
    dim_sem = ("parallel", "arbitrary", "arbitrary")
    blk_bytes = ((tT * E + S * E) * 2 + 2 * S * 4 + tT * tV * 4
                 + sum(int(w.size) * w.dtype.itemsize for w in weights))
    scr_bytes = num_heads * S * hd * 2 + tT * S * 4 + tT * S * 2
  else:
    ontoid2 = ontology_vocab_ids.reshape(1, n_onto).astype(jnp.int32)
    w1 = params["w1"].astype(bf16)
    b1 = params["b1"]
    w2 = params["w2"].astype(bf16)
    b2 = params["b2"]
    weights = (w1, b1, w2, b2)
    inputs = (dec_bf, ontoid2) + weights
    in_specs = [dec_spec, rep(ontoid2)] + [rep(w) for w in weights]
    scratch_shapes = [pltpu.VMEM((tT, n_onto), jnp.float32)]  # gated log-probs
    kernel = functools.partial(pointer_generator_train_kernel, v_tile=tV)
    dim_sem = ("parallel", "parallel", "arbitrary")
    blk_bytes = (tT * E * 2 + n_onto * 4 + tT * tV * 4
                 + sum(int(w.size) * w.dtype.itemsize for w in weights))
    scr_bytes = tT * n_onto * 4

  # VMEM budget derived from actual block sizes (x2 double-buffering + headroom),
  # capped below the queried physical capacity (64 MiB / TensorCore on v7x).
  est = 2 * blk_bytes + scr_bytes
  vmem_limit = int(min(max(2 * est, 32 << 20), int(0.85 * vmem_cap)))

  grid_spec = pltpu.PrefetchScalarGridSpec(
      num_scalar_prefetch=0,
      grid=(B, n_t, n_v),
      in_specs=in_specs,
      out_specs=out_spec,
      scratch_shapes=scratch_shapes)

  out = pl.pallas_call(
      kernel,
      out_shape=out_shape,
      grid_spec=grid_spec,
      compiler_params=pltpu.CompilerParams(
          dimension_semantics=dim_sem,
          vmem_limit_bytes=vmem_limit),
  )(*inputs)

  return out[:, :, :vocab_size] if v_pad != vocab_size else out


# ----------------------- pure-JAX reference (f32) -----------------------------
def reference_forward(source_input_ids, encoder_hidden_states, encoder_attn_mask,
                      decoder_hidden_states, params, ontology_vocab_ids, *,
                      vocab_size, num_heads, train=False):
  B, S, E = encoder_hidden_states.shape
  hd = E // num_heads
  dec, enc = decoder_hidden_states, encoder_hidden_states
  q = dec @ params["wq"] + params["bq"]
  k = enc @ params["wk"] + params["bk"]
  v = enc @ params["wv"] + params["bv"]
  neg = (1.0 - encoder_attn_mask.astype(jnp.float32))[:, None, :] * (-1e30)
  probs, ctxs = [], []
  for h in range(num_heads):
    lo = h * hd
    s = (jnp.einsum("btd,bsd->bts", q[..., lo:lo + hd], k[..., lo:lo + hd])
         / math.sqrt(hd)) + neg
    p = jax.nn.softmax(s, axis=-1)
    probs.append(p)
    ctxs.append(jnp.einsum("bts,bsd->btd", p, v[..., lo:lo + hd]))
  avg_attn = sum(probs) / num_heads
  attn_out = jnp.concatenate(ctxs, axis=-1) @ params["wo"] + params["bo"]
  copy_logits = attn_out @ params["wc"] + params["bc"]
  smax = jax.nn.log_softmax if train else jax.nn.softmax
  copy_probs = smax(copy_logits, axis=-1)
  copy_src = avg_attn * copy_probs
  src_oh = jax.nn.one_hot(source_input_ids, vocab_size, dtype=jnp.float32)
  vocab = jnp.einsum("bts,bsv->btv", copy_src, src_oh)
  h1 = jax.nn.relu(dec @ params["w1"] + params["b1"])
  onto_logits = h1 @ params["w2"] + params["b2"]
  onto_probs = smax(onto_logits, axis=-1) * (1.0 - copy_probs)
  onto_oh = jax.nn.one_hot(ontology_vocab_ids, vocab_size, dtype=jnp.float32)
  return vocab + jnp.einsum("btn,nv->btv", onto_probs, onto_oh)


# -------------------------- deterministic parameters --------------------------
def init_params(key, embed_dim, hidden_dim_list):
  ks = iter(jax.random.split(key, 32))

  def lin(in_d, out_d):
    w = 0.1 * jax.random.normal(next(ks), (in_d, out_d), jnp.float32)
    b = 0.1 * jax.random.normal(next(ks), (1, out_d), jnp.float32)
    return w, b

  p = {}
  # generator: Linear(E, H1) -> ReLU -> Dropout -> Linear(H1, n_onto)
  p["w1"], p["b1"] = lin(embed_dim, hidden_dim_list[0])
  p["w2"], p["b2"] = lin(hidden_dim_list[0], hidden_dim_list[1])
  # copier MultiheadAttention (embed_dim = E)
  p["wq"], p["bq"] = lin(embed_dim, embed_dim)
  p["wk"], p["bk"] = lin(embed_dim, embed_dim)
  p["wv"], p["bv"] = lin(embed_dim, embed_dim)
  p["wo"], p["bo"] = lin(embed_dim, embed_dim)
  # copy_head: Linear(hidden_dim_list[-1], 1)  (E == hidden_dim_list[-1] here)
  p["wc"], p["bc"] = lin(hidden_dim_list[-1], 1)
  return p


if __name__ == "__main__":
  B, S, T = 2, 8, 8           # batch, source seq, target seq
  E = 32                      # embedding dim
  NUM_HEADS = 4               # must divide E (default 12 doesn't divide 32)
  HIDDEN_DIMS = [48, 32]      # last entry = number of ontology tokens
  N_ONTO = HIDDEN_DIMS[-1]
  VOCAB = 64                  # regular ids [0, 32), ontology ids [32, 64)

  key = jax.random.PRNGKey(0)
  k_enc, k_dec, k_ids, k_par = jax.random.split(key, 4)

  encoder_hidden_states = jax.random.normal(k_enc, (B, S, E), jnp.float32)
  decoder_hidden_states = jax.random.normal(k_dec, (B, T, E), jnp.float32)
  source_input_ids = jax.random.randint(k_ids, (B, S), 0, VOCAB - N_ONTO,
                                        dtype=jnp.int32)
  encoder_attn_mask = jnp.ones((B, S), jnp.float32).at[1, -2:].set(0.0)

  params = init_params(k_par, E, HIDDEN_DIMS)
  ontology_vocab_ids = jnp.arange(VOCAB - N_ONTO, VOCAB, dtype=jnp.int32)

  # ---------------- eval mode (copy branch only, gate == 1) ----------------
  vocab_probs = pointer_generator_forward(
      source_input_ids, encoder_hidden_states, encoder_attn_mask,
      decoder_hidden_states, params, ontology_vocab_ids,
      vocab_size=VOCAB, num_heads=NUM_HEADS, train=False)
  vocab_probs = jax.block_until_ready(vocab_probs)

  assert vocab_probs.shape == (B, T, VOCAB), vocab_probs.shape
  assert bool(jnp.all(jnp.isfinite(vocab_probs)))
  # Eval distributions sum to 1 (copy gate is literally 1); bf16 scatter operands
  # introduce ~2^-9 relative rounding, hence the 1e-2 tolerance.
  row_sums = jnp.sum(vocab_probs, axis=-1)
  assert bool(jnp.allclose(row_sums, 1.0, atol=1e-2)), row_sums
  ref = reference_forward(
      source_input_ids, encoder_hidden_states, encoder_attn_mask,
      decoder_hidden_states, params, ontology_vocab_ids,
      vocab_size=VOCAB, num_heads=NUM_HEADS, train=False)
  assert bool(jnp.allclose(vocab_probs, ref, atol=2e-2)), float(
      jnp.max(jnp.abs(vocab_probs - ref)))

  # ---------------- train mode (ontology branch only, gate == 0) ----------------
  vocab_probs_tr = pointer_generator_forward(
      source_input_ids, encoder_hidden_states, encoder_attn_mask,
      decoder_hidden_states, params, ontology_vocab_ids,
      vocab_size=VOCAB, num_heads=NUM_HEADS, train=True)
  vocab_probs_tr = jax.block_until_ready(vocab_probs_tr)
  assert vocab_probs_tr.shape == (B, T, VOCAB), vocab_probs_tr.shape
  assert bool(jnp.all(jnp.isfinite(vocab_probs_tr)))
  ref_tr = reference_forward(
      source_input_ids, encoder_hidden_states, encoder_attn_mask,
      decoder_hidden_states, params, ontology_vocab_ids,
      vocab_size=VOCAB, num_heads=NUM_HEADS, train=True)
  assert bool(jnp.allclose(vocab_probs_tr, ref_tr, atol=2e-2)), float(
      jnp.max(jnp.abs(vocab_probs_tr - ref_tr)))

  print("KERNEL_OK")
</pallas_src>

<mosaic_0001>
module attributes {stable_mosaic.version = 11 : i64} {
  func.func @pointer_generator_eval_kernel(%arg0: i32, %arg1: i32, %arg2: i32, %arg3: memref<1x8x32xbf16, #tpu.memory_space<vmem>>, %arg4: memref<1x8x32xbf16, #tpu.memory_space<vmem>>, %arg5: memref<1x1x8xf32, #tpu.memory_space<vmem>>, %arg6: memref<1x1x8xi32, #tpu.memory_space<vmem>>, %arg7: memref<4x32x8xbf16, #tpu.memory_space<vmem>>, %arg8: memref<4x1x8xf32, #tpu.memory_space<vmem>>, %arg9: memref<4x32x8xbf16, #tpu.memory_space<vmem>>, %arg10: memref<4x1x8xf32, #tpu.memory_space<vmem>>, %arg11: memref<1x8x128xf32, #tpu.memory_space<vmem>>, %arg12: memref<4x8x8xbf16, #tpu.memory_space<vmem>>, %arg13: memref<8x8xf32, #tpu.memory_space<vmem>>, %arg14: memref<8x8xbf16, #tpu.memory_space<vmem>>) attributes {dimension_semantics = [#tpu.dimension_semantics<parallel>, #tpu.dimension_semantics<arbitrary>, #tpu.dimension_semantics<arbitrary>], iteration_bounds = array<i64: 2, 1, 1>, scalar_prefetch = 0 : i64, scratch_operands = 3 : i64, tpu.core_type = #tpu.core_type<tc>, window_params = [{transform_indices = @transform_0, window_bounds = array<i64: 1, 8, 32>}, {transform_indices = @transform_1, window_bounds = array<i64: 1, 8, 32>}, {transform_indices = @transform_2, window_bounds = array<i64: 1, 1, 8>}, {transform_indices = @transform_3, window_bounds = array<i64: 1, 1, 8>}, {pipeline_mode = #tpu.pipeline_mode<synchronous>, transform_indices = @transform_4, window_bounds = array<i64: 4, 32, 8>}, {pipeline_mode = #tpu.pipeline_mode<synchronous>, transform_indices = @transform_5, window_bounds = array<i64: 4, 1, 8>}, {pipeline_mode = #tpu.pipeline_mode<synchronous>, transform_indices = @transform_6, window_bounds = array<i64: 4, 32, 8>}, {pipeline_mode = #tpu.pipeline_mode<synchronous>, transform_indices = @transform_7, window_bounds = array<i64: 4, 1, 8>}, {transform_indices = @transform_8, window_bounds = array<i64: 1, 8, 128>}]} {
    %c0_i32 = arith.constant 0 : i32
    %0 = arith.cmpi eq, %arg2, %c0_i32 : i32
    %1 = arith.extui %0 : i1 to i32
    %c0_i32_0 = arith.constant 0 : i32
    %2 = arith.cmpi ne, %1, %c0_i32_0 : i32
    scf.if %2 {
      %c0_i32_8 = arith.constant 0 : i32
      %19 = arith.cmpi eq, %arg1, %c0_i32_8 : i32
      %20 = arith.extui %19 : i1 to i32
      %c0_i32_9 = arith.constant 0 : i32
      %21 = arith.cmpi ne, %20, %c0_i32_9 : i32
      scf.if %21 {
        %c0_28 = arith.constant 0 : index
        %c0_29 = arith.constant 0 : index
        %c0_30 = arith.constant 0 : index
        %38 = vector.load %arg4[%c0_28, %c0_29, %c0_30] : memref<1x8x32xbf16, #tpu.memory_space<vmem>>, vector<1x8x32xbf16>
        %39 = vector.shape_cast %38 : vector<1x8x32xbf16> to vector<8x32xbf16>
        %c0_i32_31 = arith.constant 0 : i32
        %c4_i32_32 = arith.constant 4 : i32
        %40 = arith.addi %c0_i32_31, %c4_i32_32 : i32
        %c1_i32_33 = arith.constant 1 : i32
        scf.for %arg15 = %c0_i32_31 to %40 step %c1_i32_33  : i32 {
          %41 = arith.index_cast %arg15 : i32 to index
          %c0_35 = arith.constant 0 : index
          %c0_36 = arith.constant 0 : index
          %42 = vector.load %arg9[%41, %c0_35, %c0_36] : memref<4x32x8xbf16, #tpu.memory_space<vmem>>, vector<1x32x8xbf16>
          %43 = vector.shape_cast %42 : vector<1x32x8xbf16> to vector<32x8xbf16>
          %cst_37 = arith.constant dense<0.000000e+00> : vector<8x8xf32>
          %44 = tpu.matmul %39, %43, %cst_37 {dimension_numbers = #tpu.dot_dimension_numbers<[1], [0], [0], [1], [0, 0, 1, 1], [], []>} : vector<8x32xbf16>, vector<32x8xbf16>, vector<8x8xf32> -> vector<8x8xf32>
          %45 = arith.index_cast %arg15 : i32 to index
          %c0_38 = arith.constant 0 : index
          %c0_39 = arith.constant 0 : index
          %46 = vector.load %arg10[%45, %c0_38, %c0_39] : memref<4x1x8xf32, #tpu.memory_space<vmem>>, vector<1x1x8xf32>
          %47 = vector.shape_cast %46 : vector<1x1x8xf32> to vector<1x8xf32>
          %48 = vector.broadcast %47 : vector<1x8xf32> to vector<8x8xf32>
          %49 = arith.addf %44, %48 : vector<8x8xf32>
          %50 = arith.truncf %49 : vector<8x8xf32> to vector<8x8xbf16>
          %51 = arith.index_cast %arg15 : i32 to index
          %c0_40 = arith.constant 0 : index
          %c0_41 = arith.constant 0 : index
          %52 = vector.load %arg12[%51, %c0_40, %c0_41] : memref<4x8x8xbf16, #tpu.memory_space<vmem>>, vector<1x8x8xbf16>
          %53 = vector.shape_cast %52 : vector<1x8x8xbf16> to vector<8x8xbf16>
          %54 = vector.shape_cast %50 : vector<8x8xbf16> to vector<1x8x8xbf16>
          tpu.vector_store %arg12[%51, %c0_40, %c0_41], %54 {strides = array<i32>} : memref<4x8x8xbf16, #tpu.memory_space<vmem>>, vector<1x8x8xbf16>,
        }
        %c4_i32_34 = arith.constant 4 : i32
      } else {
      }
      %c0_10 = arith.constant 0 : index
      %c0_11 = arith.constant 0 : index
      %c0_12 = arith.constant 0 : index
      %22 = vector.load %arg3[%c0_10, %c0_11, %c0_12] : memref<1x8x32xbf16, #tpu.memory_space<vmem>>, vector<1x8x32xbf16>
      %23 = vector.shape_cast %22 : vector<1x8x32xbf16> to vector<8x32xbf16>
      %c0_13 = arith.constant 0 : index
      %c0_14 = arith.constant 0 : index
      %c0_15 = arith.constant 0 : index
      %24 = vector.load %arg5[%c0_13, %c0_14, %c0_15] : memref<1x1x8xf32, #tpu.memory_space<vmem>>, vector<1x1x8xf32>
      %25 = vector.shape_cast %24 : vector<1x1x8xf32> to vector<1x8xf32>
      %cst_16 = arith.constant 1.000000e+00 : f32
      %26 = vector.broadcast %cst_16 : f32 to vector<1x8xf32>
      %27 = arith.subf %26, %25 : vector<1x8xf32>
      %cst_17 = arith.constant -1.000000e+30 : f32
      %28 = vector.broadcast %cst_17 : f32 to vector<1x8xf32>
      %29 = arith.mulf %27, %28 : vector<1x8xf32>
      %cst_18 = arith.constant 0.000000e+00 : f32
      %30 = vector.broadcast %cst_18 : f32 to vector<8x8xf32>
      %c0_19 = arith.constant 0 : index
      %c0_20 = arith.constant 0 : index
      %31 = vector.load %arg13[%c0_19, %c0_20] : memref<8x8xf32, #tpu.memory_space<vmem>>, vector<8x8xf32>
      tpu.vector_store %arg13[%c0_19, %c0_20], %30 {strides = array<i32>} : memref<8x8xf32, #tpu.memory_space<vmem>>, vector<8x8xf32>,
      %c0_i32_21 = arith.constant 0 : i32
      %c4_i32 = arith.constant 4 : i32
      %32 = arith.addi %c0_i32_21, %c4_i32 : i32
      %c1_i32 = arith.constant 1 : i32
      scf.for %arg15 = %c0_i32_21 to %32 step %c1_i32  : i32 {
        %38 = arith.index_cast %arg15 : i32 to index
        %c0_28 = arith.constant 0 : index
        %c0_29 = arith.constant 0 : index
        %39 = vector.load %arg7[%38, %c0_28, %c0_29] : memref<4x32x8xbf16, #tpu.memory_space<vmem>>, vector<1x32x8xbf16>
        %40 = vector.shape_cast %39 : vector<1x32x8xbf16> to vector<32x8xbf16>
        %cst_30 = arith.constant dense<0.000000e+00> : vector<8x8xf32>
        %41 = tpu.matmul %23, %40, %cst_30 {dimension_numbers = #tpu.dot_dimension_numbers<[1], [0], [0], [1], [0, 0, 1, 1], [], []>} : vector<8x32xbf16>, vector<32x8xbf16>, vector<8x8xf32> -> vector<8x8xf32>
        %42 = arith.index_cast %arg15 : i32 to index
        %c0_31 = arith.constant 0 : index
        %c0_32 = arith.constant 0 : index
        %43 = vector.load %arg8[%42, %c0_31, %c0_32] : memref<4x1x8xf32, #tpu.memory_space<vmem>>, vector<1x1x8xf32>
        %44 = vector.shape_cast %43 : vector<1x1x8xf32> to vector<1x8xf32>
        %45 = vector.broadcast %44 : vector<1x8xf32> to vector<8x8xf32>
        %46 = arith.addf %41, %45 : vector<8x8xf32>
        %47 = arith.truncf %46 : vector<8x8xf32> to vector<8x8xbf16>
        %48 = arith.index_cast %arg15 : i32 to index
        %c0_33 = arith.constant 0 : index
        %c0_34 = arith.constant 0 : index
        %49 = vector.load %arg12[%48, %c0_33, %c0_34] : memref<4x8x8xbf16, #tpu.memory_space<vmem>>, vector<1x8x8xbf16>
        %50 = vector.shape_cast %49 : vector<1x8x8xbf16> to vector<8x8xbf16>
        %cst_35 = arith.constant dense<0.000000e+00> : vector<8x8xf32>
        %51 = tpu.matmul %47, %50, %cst_35 {dimension_numbers = #tpu.dot_dimension_numbers<[1], [1], [0], [0], [0, 0, 1, 0], [], []>} : vector<8x8xbf16>, vector<8x8xbf16>, vector<8x8xf32> -> vector<8x8xf32>
        %cst_36 = arith.constant 0.353553385 : f32
        %52 = vector.broadcast %cst_36 : f32 to vector<8x8xf32>
        %53 = arith.mulf %51, %52 : vector<8x8xf32>
        %54 = vector.broadcast %29 : vector<1x8xf32> to vector<8x8xf32>
        %55 = arith.addf %53, %54 : vector<8x8xf32>
        %c0_37 = arith.constant 0 : index
        %c0_38 = arith.constant 0 : index
        %56 = vector.load %arg13[%c0_37, %c0_38] : memref<8x8xf32, #tpu.memory_space<vmem>>, vector<8x8xf32>
        %cst_39 = arith.constant dense<0xFF800000> : vector<8xf32>
        %57 = vector.multi_reduction <maximumf>, %55, %cst_39 [1] : vector<8x8xf32> to vector<8xf32>
        %58 = vector.shape_cast %57 : vector<8xf32> to vector<8x1xf32>
        %59 = vector.broadcast %58 : vector<8x1xf32> to vector<8x8xf32>
        %60 = arith.subf %55, %59 : vector<8x8xf32>
        %61 = math.exp %60 : vector<8x8xf32>
        %cst_40 = arith.constant dense<0.000000e+00> : vector<8xf32>
        %62 = vector.multi_reduction <add>, %61, %cst_40 [1] : vector<8x8xf32> to vector<8xf32>
        %63 = vector.shape_cast %62 : vector<8xf32> to vector<8x1xf32>
        %64 = vector.broadcast %63 : vector<8x1xf32> to vector<8x8xf32>
        %65 = arith.divf %61, %64 : vector<8x8xf32>
        %66 = arith.addf %56, %65 : vector<8x8xf32>
        %c0_41 = arith.constant 0 : index
        %c0_42 = arith.constant 0 : index
        %67 = vector.load %arg13[%c0_41, %c0_42] : memref<8x8xf32, #tpu.memory_space<vmem>>, vector<8x8xf32>
        tpu.vector_store %arg13[%c0_41, %c0_42], %66 {strides = array<i32>} : memref<8x8xf32, #tpu.memory_space<vmem>>, vector<8x8xf32>,
      }
      %c4_i32_22 = arith.constant 4 : i32
      %c0_23 = arith.constant 0 : index
      %c0_24 = arith.constant 0 : index
      %33 = vector.load %arg13[%c0_23, %c0_24] : memref<8x8xf32, #tpu.memory_space<vmem>>, vector<8x8xf32>
      %cst_25 = arith.constant 2.500000e-01 : f32
      %34 = vector.broadcast %cst_25 : f32 to vector<8x8xf32>
      %35 = arith.mulf %33, %34 : vector<8x8xf32>
      %36 = arith.truncf %35 : vector<8x8xf32> to vector<8x8xbf16>
      %c0_26 = arith.constant 0 : index
      %c0_27 = arith.constant 0 : index
      %37 = vector.load %arg14[%c0_26, %c0_27] : memref<8x8xbf16, #tpu.memory_space<vmem>>, vector<8x8xbf16>
      tpu.vector_store %arg14[%c0_26, %c0_27], %36 {strides = array<i32>} : memref<8x8xbf16, #tpu.memory_space<vmem>>, vector<8x8xbf16>,
    } else {
    }
    %c0 = arith.constant 0 : index
    %c0_1 = arith.constant 0 : index
    %c0_2 = arith.constant 0 : index
    %3 = vector.load %arg6[%c0, %c0_1, %c0_2] : memref<1x1x8xi32, #tpu.memory_space<vmem>>, vector<1x1x8xi32>
    %4 = vector.shape_cast %3 : vector<1x1x8xi32> to vector<1x8xi32>
    %c128_i32 = arith.constant 128 : i32
    %5 = arith.muli %arg2, %c128_i32 : i32
    %6 = vector.broadcast %5 : i32 to vector<1x8xi32>
    %7 = arith.subi %4, %6 : vector<1x8xi32>
    %8 = tpu.iota {dimensions = array<i32: 0>} : vector<128x8xi32>
    %9 = vector.broadcast %7 : vector<1x8xi32> to vector<128x8xi32>
    %10 = arith.cmpi eq, %8, %9 : vector<128x8xi32>
    %11 = arith.extui %10 : vector<128x8xi1> to vector<128x8xi32>
    %12 = arith.sitofp %11 : vector<128x8xi32> to vector<128x8xf32>
    %13 = arith.truncf %12 : vector<128x8xf32> to vector<128x8xbf16>
    %c0_3 = arith.constant 0 : index
    %c0_4 = arith.constant 0 : index
    %14 = vector.load %arg14[%c0_3, %c0_4] : memref<8x8xbf16, #tpu.memory_space<vmem>>, vector<8x8xbf16>
    %cst = arith.constant dense<0.000000e+00> : vector<8x128xf32>
    %15 = tpu.matmul %14, %13, %cst {dimension_numbers = #tpu.dot_dimension_numbers<[1], [1], [0], [0], [0, 0, 1, 0], [], []>} : vector<8x8xbf16>, vector<128x8xbf16>, vector<8x128xf32> -> vector<8x128xf32>
    %c0_5 = arith.constant 0 : index
    %c0_6 = arith.constant 0 : index
    %c0_7 = arith.constant 0 : index
    %16 = vector.load %arg11[%c0_5, %c0_6, %c0_7] : memref<1x8x128xf32, #tpu.memory_space<vmem>>, vector<1x8x128xf32>
    %17 = vector.shape_cast %16 : vector<1x8x128xf32> to vector<8x128xf32>
    %18 = vector.shape_cast %15 : vector<8x128xf32> to vector<1x8x128xf32>
    tpu.vector_store %arg11[%c0_5, %c0_6, %c0_7], %18 {strides = array<i32>} : memref<1x8x128xf32, #tpu.memory_space<vmem>>, vector<1x8x128xf32>,
    return
  }
  func.func @transform_0(%arg0: i32, %arg1: i32, %arg2: i32) -> (i32, i32, i32) {
    %c0_i32 = arith.constant 0 : i32
    %c0_i32_0 = arith.constant 0 : i32
    return %arg0, %arg1, %c0_i32 : i32, i32, i32
  }
  func.func @transform_1(%arg0: i32, %arg1: i32, %arg2: i32) -> (i32, i32, i32) {
    %c0_i32 = arith.constant 0 : i32
    %c0_i32_0 = arith.constant 0 : i32
    %c0_i32_1 = arith.constant 0 : i32
    return %arg0, %c0_i32, %c0_i32_0 : i32, i32, i32
  }
  func.func @transform_2(%arg0: i32, %arg1: i32, %arg2: i32) -> (i32, i32, i32) {
    %c0_i32 = arith.constant 0 : i32
    %c0_i32_0 = arith.constant 0 : i32
    %c0_i32_1 = arith.constant 0 : i32
    return %arg0, %c0_i32, %c0_i32_0 : i32, i32, i32
  }
  func.func @transform_3(%arg0: i32, %arg1: i32, %arg2: i32) -> (i32, i32, i32) {
    %c0_i32 = arith.constant 0 : i32
    %c0_i32_0 = arith.constant 0 : i32
    %c0_i32_1 = arith.constant 0 : i32
    return %arg0, %c0_i32, %c0_i32_0 : i32, i32, i32
  }
  func.func @transform_4(%arg0: i32, %arg1: i32, %arg2: i32) -> (i32, i32, i32) {
    %c0_i32 = arith.constant 0 : i32
    %c0_i32_0 = arith.constant 0 : i32
    %c0_i32_1 = arith.constant 0 : i32
    %c0_i32_2 = arith.constant 0 : i32
    return %c0_i32, %c0_i32_0, %c0_i32_1 : i32, i32, i32
  }
  func.func @transform_5(%arg0: i32, %arg1: i32, %arg2: i32) -> (i32, i32, i32) {
    %c0_i32 = arith.constant 0 : i32
    %c0_i32_0 = arith.constant 0 : i32
    %c0_i32_1 = arith.constant 0 : i32
    %c0_i32_2 = arith.constant 0 : i32
    return %c0_i32, %c0_i32_0, %c0_i32_1 : i32, i32, i32
  }
  func.func @transform_6(%arg0: i32, %arg1: i32, %arg2: i32) -> (i32, i32, i32) {
    %c0_i32 = arith.constant 0 : i32
    %c0_i32_0 = arith.constant 0 : i32
    %c0_i32_1 = arith.constant 0 : i32
    %c0_i32_2 = arith.constant 0 : i32
    return %c0_i32, %c0_i32_0, %c0_i32_1 : i32, i32, i32
  }
  func.func @transform_7(%arg0: i32, %arg1: i32, %arg2: i32) -> (i32, i32, i32) {
    %c0_i32 = arith.constant 0 : i32
    %c0_i32_0 = arith.constant 0 : i32
    %c0_i32_1 = arith.constant 0 : i32
    %c0_i32_2 = arith.constant 0 : i32
    return %c0_i32, %c0_i32_0, %c0_i32_1 : i32, i32, i32
  }
  func.func @transform_8(%arg0: i32, %arg1: i32, %arg2: i32) -> (i32, i32, i32) {
    %c0_i32 = arith.constant 0 : i32
    return %arg0, %arg1, %arg2 : i32, i32, i32
  }
}

</mosaic_0001>

<llo_original>
// kernel: tpu_custom_call.1
$region0: #{tpu_custom_call.1}
  #allocation0 [shape = 'u32[]', space=smem, size = 0x4, offset = 0x4, fixed_abs, tag = 'smem constant byte address 0x4 - core index']
  #allocation1 [shape = 'u32[144,128]{1,0:T(1,128)}', space=vmem, size = 0x12000, scoped, tag = 'internal scratch']
  #allocation2 [shape = 'bf16[4,8,8]{2,1,0:T(8,128)(2,1)}', space=vmem, size = 0x2000, scoped, tag = 'scratch operand']
  #allocation3 [shape = 'f32[8,8]{1,0:T(8,128)}', space=vmem, size = 0x1000, scoped, tag = 'scratch operand']
  #allocation4 [shape = 'bf16[8,8]{1,0:T(8,128)(2,1)}', space=vmem, size = 0x800, scoped, tag = 'scratch operand']
  %s0 = inlined_call_operand.vmem [shape: bf16[2,8,32], index: 0, kind: input, shape index: {}]
  %s1 = inlined_call_operand.vmem [shape: bf16[2,8,32], index: 1, kind: input, shape index: {}]
  %s2 = inlined_call_operand.vmem [shape: f32[2,1,8], index: 2, kind: input, shape index: {}]
  %s3 = inlined_call_operand.vmem [shape: s32[2,1,8], index: 3, kind: input, shape index: {}]
  %s4 = inlined_call_operand.vmem [shape: bf16[4,32,8], index: 4, kind: input, shape index: {}]
  %s5 = inlined_call_operand.vmem [shape: f32[4,1,8], index: 5, kind: input, shape index: {}]
  %s6 = inlined_call_operand.vmem [shape: bf16[4,32,8], index: 6, kind: input, shape index: {}]
  %s7 = inlined_call_operand.vmem [shape: f32[4,1,8], index: 7, kind: input, shape index: {}]
  %s8 = inlined_call_operand.hbm [shape: f32[2,8,128], index: 8, kind: output, shape index: {}]
  %s9 = sld [smem:[#allocation0]]
  $region87: #{tpu_custom_call.1} parent=0
    _
  %s11 = ssub.s32 1, %s9
  %s12 = scalar_select 0, %s11, %s9
  $region1: #{tpu_custom_call.1} parent=0
    #allocation5 [shape = 'u8[8192]{0}', space=vmem, size = 0x2000, scoped, tag = 'output window, operand 0']
    #allocation6 [shape = 's32[2]{0}', space=sflag, size = 0x8, scoped, tag = 'scoped memory for tpu_custom_call.1']
    %13 = vsyncpa [#allocation6], 0
    %s14 = scalar_lea.sflag [#allocation6], 1
    %15 = vsyncpa %s14, 0
    loop: start=0, step=1, limit=4
    $region2: #{tpu_custom_call.1} parent=1 // loop_pre_header
      _
    $region3: #{tpu_custom_call.1} parent=1 // loop_header
      %s17 = sphi 0, %s21
      %p18 = scmp.ge.s32.totalorder %s17, 4
      %s24 = sphi 0, %s43
      %s25 = sphi 0, %s39
      %s26 = sphi 0, %s35
      %s27 = sphi 0, %s24
      %s28 = sphi 0, %s25
      %s29 = sphi 0, %s26
      %s30 = sphi 0, %s27
      %s31 = sphi 0, %s28
      %s32 = sphi 0, %s29
      %s48 = sphi 0, %s50
      %s51 = sphi 0, %s48
      %s52 = sphi 0, %s51
      %s68 = sphi 0, %s52
      %s74 = sphi 0, %s76
      %s77 = sphi 0, %s74
      %s78 = sphi 0, %s77
      %s94 = sphi 0, %s78
      %s100 = sphi 0, %s102
      %s103 = sphi 0, %s100
      %s104 = sphi 0, %s103
      %s120 = sphi 0, %s104
      %s126 = sphi 0, %s128
      %s129 = sphi 0, %s126
      %s130 = sphi 0, %s129
      %s146 = sphi 0, %s130
      %s150 = sphi 0, %s150
      %s152 = sphi 0, %s150
      %s153 = sphi 0, %s152
      %s167 = sphi 0, %s153
      %s171 = sphi 0, %s171
      %s173 = sphi 0, %s171
      %s174 = sphi 0, %s173
      %s188 = sphi 0, %s174
      %s192 = sphi 0, %s192
      %s194 = sphi 0, %s192
      %s195 = sphi 0, %s194
      %s209 = sphi 0, %s195
      %s213 = sphi 0, %s213
      %s215 = sphi 0, %s213
      %s216 = sphi 0, %s215
      %s230 = sphi 0, %s216
      %s240 = sphi 0, %s242
      %s243 = sphi 0, %s240
      %s244 = sphi 0, %s243
      %s260 = sphi 0, %s244
    $region4: #{tpu_custom_call.1} parent=1 // loop_header_branch
      %20 = sbr.rel (%p18) target = $region8
    $region5: #{tpu_custom_call.1} parent=1 // loop_body
      %s22 = ssub.s32 %s17, 1
      %s23 = ssub.s32 %s17, 2
      %s33 = sadd.s32 1, %s26
      %p34 = scmp.ge.s32.totalorder %s33, 1
      %s35 = scalar_select %p34, 0, %s33
      %s36 = sadd.s32 1, %s25
      %s37 = scalar_select %p34, %s36, %s25
      %p38 = scmp.ge.s32.totalorder %s37, 1
      %s39 = scalar_select %p38, 0, %s37
      %s40 = sadd.s32 1, %s24
      %s41 = scalar_select %p38, %s40, %s24
      %p42 = scmp.ge.s32.totalorder %s41, 2
      %s43 = scalar_select %p42, 0, %s41
      %s44 = ssub.s32 %s24, %s43
      %s45 = ssub.s32 %s25, %s39
      %s46 = sor.u32 %s44, %s45
      %p47 = scmp.eq.s32.totalorder %s46, 0
      %s49 = sadd.s32 %s48, 1
      %s50 = scalar_select %p47, %s48, %s49
      %p53 = pneg %p47
      %p54 = scmp.eq.s32.totalorder %s17, 1
      %p55 = por %p53, %p54
      %p56 = scmp.ne.s32.totalorder %s48, %s51
      %p57 = scmp.eq.s32.totalorder %s17, 0
      %p58 = por %p56, %p57
      %p59 = scmp.ne.s32.totalorder %s48, %s51
      %p60 = scmp.eq.s32.totalorder %s22, 1
      %p61 = por %p59, %p60
      %p62 = scmp.ne.s32.totalorder %s51, %s52
      %p63 = scmp.eq.s32.totalorder %s22, 0
      %p64 = por %p62, %p63
      %p65 = scmp.ne.s32.totalorder %s51, %s52
      %p66 = scmp.eq.s32.totalorder %s23, 1
      %p67 = por %p65, %p66
      %p69 = scmp.ne.s32.totalorder %s52, %s68
      %p70 = scmp.eq.s32.totalorder %s23, 0
      %p71 = por %p69, %p70
      %s72 = ssub.s32 %s24, %s43
      %p73 = scmp.eq.s32.totalorder %s72, 0
      %s75 = sadd.s32 %s74, 1
      %s76 = scalar_select %p73, %s74, %s75
      %p79 = pneg %p73
      %p80 = scmp.eq.s32.totalorder %s17, 1
      %p81 = por %p79, %p80
      %p82 = scmp.ne.s32.totalorder %s74, %s77
      %p83 = scmp.eq.s32.totalorder %s17, 0
      %p84 = por %p82, %p83
      %p85 = scmp.ne.s32.totalorder %s74, %s77
      %p86 = scmp.eq.s32.totalorder %s22, 1
      %p87 = por %p85, %p86
      %p88 = scmp.ne.s32.totalorder %s77, %s78
      %p89 = scmp.eq.s32.totalorder %s22, 0
      %p90 = por %p88, %p89
      %p91 = scmp.ne.s32.totalorder %s77, %s78
      %p92 = scmp.eq.s32.totalorder %s23, 1
      %p93 = por %p91, %p92
      %p95 = scmp.ne.s32.totalorder %s78, %s94
      %p96 = scmp.eq.s32.totalorder %s23, 0
      %p97 = por %p95, %p96
      %s98 = ssub.s32 %s24, %s43
      %p99 = scmp.eq.s32.totalorder %s98, 0
      %s101 = sadd.s32 %s100, 1
      %s102 = scalar_select %p99, %s100, %s101
      %p105 = pneg %p99
      %p106 = scmp.eq.s32.totalorder %s17, 1
      %p107 = por %p105, %p106
      %p108 = scmp.ne.s32.totalorder %s100, %s103
      %p109 = scmp.eq.s32.totalorder %s17, 0
      %p110 = por %p108, %p109
      %p111 = scmp.ne.s32.totalorder %s100, %s103
      %p112 = scmp.eq.s32.totalorder %s22, 1
      %p113 = por %p111, %p112
      %p114 = scmp.ne.s32.totalorder %s103, %s104
      %p115 = scmp.eq.s32.totalorder %s22, 0
      %p116 = por %p114, %p115
      %p117 = scmp.ne.s32.totalorder %s103, %s104
      %p118 = scmp.eq.s32.totalorder %s23, 1
      %p119 = por %p117, %p118
      %p121 = scmp.ne.s32.totalorder %s104, %s120
      %p122 = scmp.eq.s32.totalorder %s23, 0
      %p123 = por %p121, %p122
      %s124 = ssub.s32 %s24, %s43
      %p125 = scmp.eq.s32.totalorder %s124, 0
      %s127 = sadd.s32 %s126, 1
      %s128 = scalar_select %p125, %s126, %s127
      %p131 = pneg %p125
      %p132 = scmp.eq.s32.totalorder %s17, 1
      %p133 = por %p131, %p132
      %p134 = scmp.ne.s32.totalorder %s126, %s129
      %p135 = scmp.eq.s32.totalorder %s17, 0
      %p136 = por %p134, %p135
      %p137 = scmp.ne.s32.totalorder %s126, %s129
      %p138 = scmp.eq.s32.totalorder %s22, 1
      %p139 = por %p137, %p138
      %p140 = scmp.ne.s32.totalorder %s129, %s130
      %p141 = scmp.eq.s32.totalorder %s22, 0
      %p142 = por %p140, %p141
      %p143 = scmp.ne.s32.totalorder %s129, %s130
      %p144 = scmp.eq.s32.totalorder %s23, 1
      %p145 = por %p143, %p144
      %p147 = scmp.ne.s32.totalorder %s130, %s146
      %p148 = scmp.eq.s32.totalorder %s23, 0
      %p149 = por %p147, %p148
      %s151 = sadd.s32 %s150, 1
      %p154 = scmp.eq.s32.totalorder %s17, 1
      %p155 = scmp.ne.s32.totalorder %s150, %s152
      %p156 = scmp.eq.s32.totalorder %s17, 0
      %p157 = por %p155, %p156
      %p158 = scmp.ne.s32.totalorder %s150, %s152
      %p159 = scmp.eq.s32.totalorder %s22, 1
      %p160 = por %p158, %p159
      %p161 = scmp.ne.s32.totalorder %s152, %s153
      %p162 = scmp.eq.s32.totalorder %s22, 0
      %p163 = por %p161, %p162
      %p164 = scmp.ne.s32.totalorder %s152, %s153
      %p165 = scmp.eq.s32.totalorder %s23, 1
      %p166 = por %p164, %p165
      %p168 = scmp.ne.s32.totalorder %s153, %s167
      %p169 = scmp.eq.s32.totalorder %s23, 0
      %p170 = por %p168, %p169
      %s172 = sadd.s32 %s171, 1
      %p175 = scmp.eq.s32.totalorder %s17, 1
      %p176 = scmp.ne.s32.totalorder %s171, %s173
      %p177 = scmp.eq.s32.totalorder %s17, 0
      %p178 = por %p176, %p177
      %p179 = scmp.ne.s32.totalorder %s171, %s173
      %p180 = scmp.eq.s32.totalorder %s22, 1
      %p181 = por %p179, %p180
      %p182 = scmp.ne.s32.totalorder %s173, %s174
      %p183 = scmp.eq.s32.totalorder %s22, 0
      %p184 = por %p182, %p183
      %p185 = scmp.ne.s32.totalorder %s173, %s174
      %p186 = scmp.eq.s32.totalorder %s23, 1
      %p187 = por %p185, %p186
      %p189 = scmp.ne.s32.totalorder %s174, %s188
      %p190 = scmp.eq.s32.totalorder %s23, 0
      %p191 = por %p189, %p190
      %s193 = sadd.s32 %s192, 1
      %p196 = scmp.eq.s32.totalorder %s17, 1
      %p197 = scmp.ne.s32.totalorder %s192, %s194
      %p198 = scmp.eq.s32.totalorder %s17, 0
      %p199 = por %p197, %p198
      %p200 = scmp.ne.s32.totalorder %s192, %s194
      %p201 = scmp.eq.s32.totalorder %s22, 1
      %p202 = por %p200, %p201
      %p203 = scmp.ne.s32.totalorder %s194, %s195
      %p204 = scmp.eq.s32.totalorder %s22, 0
      %p205 = por %p203, %p204
      %p206 = scmp.ne.s32.totalorder %s194, %s195
      %p207 = scmp.eq.s32.totalorder %s23, 1
      %p208 = por %p206, %p207
      %p210 = scmp.ne.s32.totalorder %s195, %s209
      %p211 = scmp.eq.s32.totalorder %s23, 0
      %p212 = por %p210, %p211
      %s214 = sadd.s32 %s213, 1
      %p217 = scmp.eq.s32.totalorder %s17, 1
      %p218 = scmp.ne.s32.totalorder %s213, %s215
      %p219 = scmp.eq.s32.totalorder %s17, 0
      %p220 = por %p218, %p219
      %p221 = scmp.ne.s32.totalorder %s213, %s215
      %p222 = scmp.eq.s32.totalorder %s22, 1
      %p223 = por %p221, %p222
      %p224 = scmp.ne.s32.totalorder %s215, %s216
      %p225 = scmp.eq.s32.totalorder %s22, 0
      %p226 = por %p224, %p225
      %p227 = scmp.ne.s32.totalorder %s215, %s216
      %p228 = scmp.eq.s32.totalorder %s23, 1
      %p229 = por %p227, %p228
      %p231 = scmp.ne.s32.totalorder %s216, %s230
      %p232 = scmp.eq.s32.totalorder %s23, 0
      %p233 = por %p231, %p232
      %s234 = ssub.s32 %s24, %s43
      %s235 = ssub.s32 %s25, %s39
      %s236 = sor.u32 %s234, %s235
      %s237 = ssub.s32 %s26, %s35
      %s238 = sor.u32 %s236, %s237
      %p239 = scmp.eq.s32.totalorder %s238, 0
      %s241 = sadd.s32 %s240, 1
      %s242 = scalar_select %p239, %s240, %s241
      %p245 = pneg %p239
      %p246 = scmp.eq.s32.totalorder %s17, 1
      %p247 = por %p245, %p246
      %p248 = scmp.ne.s32.totalorder %s240, %s243
      %p249 = scmp.eq.s32.totalorder %s17, 0
      %p250 = por %p248, %p249
      %p251 = scmp.ne.s32.totalorder %s240, %s243
      %p252 = scmp.eq.s32.totalorder %s22, 1
      %p253 = por %p251, %p252
      %p254 = scmp.ne.s32.totalorder %s243, %s244
      %p255 = scmp.eq.s32.totalorder %s22, 0
      %p256 = por %p254, %p255
      %p257 = scmp.ne.s32.totalorder %s243, %s244
      %p258 = scmp.eq.s32.totalorder %s23, 1
      %p259 = por %p257, %p258
      %p261 = scmp.ne.s32.totalorder %s244, %s260
      %p262 = scmp.eq.s32.totalorder %s23, 0
      %p263 = por %p261, %p262
      %p264 = scmp.le.s32.totalorder 1, %s17
      %p265 = scmp.lt.s32.totalorder %s17, 3
      %p266 = pnand %p264, %p265
      %p267 = pneg %p266
      // Predicated region
      $region9: #{tpu_custom_call.1} parent=5 // pred_check
        _
      $region10: #{tpu_custom_call.1} parent=5 // pred_check_branch
        %269 = sbr.rel (%p266) target = $region12
      $region11: #{tpu_custom_call.1} parent=5 // pred_region
        %s270 = ssub.s32 %s17, 1
        // Predicated region
        $region13: #{tpu_custom_call.1} parent=11 // pred_check
          %p271 = pneg %p163
        $region14: #{tpu_custom_call.1} parent=11 // pred_check_branch
          %273 = sbr.rel (%p271) target = $region16
        $region15: #{tpu_custom_call.1} parent=11 // pred_region
          _
        $region16: #{tpu_custom_call.1} parent=11 // pred_fallthru
          _
        // Predicated region
        $region17: #{tpu_custom_call.1} parent=11 // pred_check
          %p274 = pneg %p184
        $region18: #{tpu_custom_call.1} parent=11 // pred_check_branch
          %276 = sbr.rel (%p274) target = $region20
        $region19: #{tpu_custom_call.1} parent=11 // pred_region
          _
        $region20: #{tpu_custom_call.1} parent=11 // pred_fallthru
          _
        // Predicated region
        $region21: #{tpu_custom_call.1} parent=11 // pred_check
          %p277 = pneg %p205
        $region22: #{tpu_custom_call.1} parent=11 // pred_check_branch
          %279 = sbr.rel (%p277) target = $region24
        $region23: #{tpu_custom_call.1} parent=11 // pred_region
          _
        $region24: #{tpu_custom_call.1} parent=11 // pred_fallthru
          _
        // Predicated region
        $region25: #{tpu_custom_call.1} parent=11 // pred_check
          %p280 = pneg %p226
        $region26: #{tpu_custom_call.1} parent=11 // pred_check_branch
          %282 = sbr.rel (%p280) target = $region28
        $region27: #{tpu_custom_call.1} parent=11 // pred_region
          _
        $region28: #{tpu_custom_call.1} parent=11 // pred_fallthru
          _
      $region12: #{tpu_custom_call.1} parent=5 // pred_fallthru
        _
      %p283 = scmp.lt.s32.totalorder %s17, 2
      // Predicated region
      $region29: #{tpu_custom_call.1} parent=5 // pred_check
        %p284 = pneg %p283
      $region30: #{tpu_custom_call.1} parent=5 // pred_check_branch
        %286 = sbr.rel (%p284) target = $region32
      $region31: #{tpu_custom_call.1} parent=5 // pred_region
        // Predicated region
        $region33: #{tpu_custom_call.1} parent=31 // pred_check
          %p287 = pneg %p58
        $region34: #{tpu_custom_call.1} parent=31 // pred_check_branch
          %289 = sbr.rel (%p287) target = $region36
        $region35: #{tpu_custom_call.1} parent=31 // pred_region
          %p290 = scmp.lt.s32.totalorder %s24, 1
          %s291 = scalar_select %p290, %s24, 1
          %p292 = scmp.lt.s32.totalorder %s25, 0
          %s293 = scalar_select %p292, %s25, 0
          %s294 = sadd.s32 %s293, %s291
          %s295 = smul.addr %s294, 4
          %s296 = scalar_lea.vmem %s0, %s295
        $region36: #{tpu_custom_call.1} parent=31 // pred_fallthru
          _
        // Predicated region
        $region37: #{tpu_custom_call.1} parent=31 // pred_check
          %p297 = pneg %p84
        $region38: #{tpu_custom_call.1} parent=31 // pred_check_branch
          %299 = sbr.rel (%p297) target = $region40
        $region39: #{tpu_custom_call.1} parent=31 // pred_region
          %p300 = scmp.lt.s32.totalorder %s24, 1
          %s301 = scalar_select %p300, %s24, 1
          %s302 = smul.addr %s301, 4
          %s303 = scalar_lea.vmem %s1, %s302
        $region40: #{tpu_custom_call.1} parent=31 // pred_fallthru
          _
        // Predicated region
        $region41: #{tpu_custom_call.1} parent=31 // pred_check
          %p304 = pneg %p110
        $region42: #{tpu_custom_call.1} parent=31 // pred_check_branch
          %306 = sbr.rel (%p304) target = $region44
        $region43: #{tpu_custom_call.1} parent=31 // pred_region
          %p307 = scmp.lt.s32.totalorder %s24, 1
          %s308 = scalar_select %p307, %s24, 1
          %s309 = scalar_lea.vmem %s2, %s308
        $region44: #{tpu_custom_call.1} parent=31 // pred_fallthru
          _
        // Predicated region
        $region45: #{tpu_custom_call.1} parent=31 // pred_check
          %p310 = pneg %p136
        $region46: #{tpu_custom_call.1} parent=31 // pred_check_branch
          %312 = sbr.rel (%p310) target = $region48
        $region47: #{tpu_custom_call.1} parent=31 // pred_region
          %p313 = scmp.lt.s32.totalorder %s24, 1
          %s314 = scalar_select %p313, %s24, 1
          %s315 = scalar_lea.vmem %s3, %s314
        $region48: #{tpu_custom_call.1} parent=31 // pred_fallthru
          _
      $region32: #{tpu_custom_call.1} parent=5 // pred_fallthru
        _
      %p316 = scmp.le.s32.totalorder 1, %s17
      %p317 = scmp.lt.s32.totalorder %s17, 3
      %p318 = pnand %p316, %p317
      %p319 = pneg %p318
      // Predicated region
      $region49: #{tpu_custom_call.1} parent=5 // pred_check
        _
      $region50: #{tpu_custom_call.1} parent=5 // pred_check_branch
        %321 = sbr.rel (%p318) target = $region52
      $region51: #{tpu_custom_call.1} parent=5 // pred_region
        %s322 = ssub.s32 %s17, 1
        %p323 = scmp.lt.s32.totalorder %s27, 1
        %s324 = scalar_select %p323, %s27, 1
        %p325 = scmp.lt.s32.totalorder %s28, 0
        %s326 = scalar_select %p325, %s28, 0
        %s327 = sadd.s32 %s326, %s324
        %s328 = smul.addr %s327, 4
        %s329 = scalar_lea.vmem %s0, %s328
        %p330 = pneg %p64
        %p331 = pneg %p61
        %p332 = scmp.lt.s32.totalorder %s27, 1
        %s333 = scalar_select %p332, %s27, 1
        %s334 = smul.addr %s333, 4
        %s335 = scalar_lea.vmem %s1, %s334
        %p336 = pneg %p90
        %p337 = pneg %p87
        %p338 = scmp.lt.s32.totalorder %s27, 1
        %s339 = scalar_select %p338, %s27, 1
        %s340 = scalar_lea.vmem %s2, %s339
        %p341 = pneg %p116
        %p342 = pneg %p113
        %p343 = scmp.lt.s32.totalorder %s27, 1
        %s344 = scalar_select %p343, %s27, 1
        %s345 = scalar_lea.vmem %s3, %s344
        %p346 = pneg %p142
        %p347 = pneg %p139
        %p348 = pneg %p163
        %p349 = pneg %p160
        %p350 = pneg %p184
        %p351 = pneg %p181
        %p352 = pneg %p205
        %p353 = pneg %p202
        %p354 = pneg %p226
        %p355 = pneg %p223
        %p356 = pneg %p256
        %p357 = pneg %p253
        %s358 = sand.u32 %s243, 1
        %s359 = scalar_lea.sflag [#allocation6], %s358
        %s360 = sand.u32 %s243, 1
        %s361 = smul.addr %s360, 8
        %s362 = scalar_lea.vmem [#allocation5], %s361
        %p363 = scmp.lt.s32.totalorder %s27, 1
        %s364 = scalar_select %p363, %s27, 1
        %p365 = scmp.lt.s32.totalorder %s28, 0
        %s366 = scalar_select %p365, %s28, 0
        %s367 = sadd.s32 %s366, %s364
        %s368 = smul.addr %s367, 4
        %s369 = scalar_lea.vmem %s0, %s368
        %p370 = scmp.lt.s32.totalorder %s27, 1
        %s371 = scalar_select %p370, %s27, 1
        %s372 = smul.addr %s371, 4
        %s373 = scalar_lea.vmem %s1, %s372
        %p374 = scmp.lt.s32.totalorder %s27, 1
        %s375 = scalar_select %p374, %s27, 1
        %s376 = scalar_lea.vmem %s2, %s375
        %p377 = scmp.lt.s32.totalorder %s27, 1
        %s378 = scalar_select %p377, %s27, 1
        %s379 = scalar_lea.vmem %s3, %s378
        %p381 = scmp.eq.s32.totalorder %s29, 0
        // Predicated region
        $region53: #{tpu_custom_call.1} parent=51 // pred_check
          %p382 = pneg %p381
        $region54: #{tpu_custom_call.1} parent=51 // pred_check_branch
          %384 = sbr.rel (%p382) target = $region56
        $region55: #{tpu_custom_call.1} parent=51 // pred_region
          %p385 = scmp.eq.s32.totalorder %s28, 0
          // Predicated region
          $region57: #{tpu_custom_call.1} parent=55 // pred_check
            %p386 = pneg %p385
          $region58: #{tpu_custom_call.1} parent=55 // pred_check_branch
            %388 = sbr.rel (%p386) target = $region60
          $region59: #{tpu_custom_call.1} parent=55 // pred_region
            %v389 = vld [vmem:[%s373] sm:$0xf]
            loop: start=0, step=1, limit=4
            $region61: #{tpu_custom_call.1} parent=59 // loop_pre_header
              _
            $region62: #{tpu_custom_call.1} parent=59 // loop_header
              %s391 = sphi 0, %s395
              %p392 = scmp.ge.s32.totalorder %s391, 4
            $region63: #{tpu_custom_call.1} parent=59 // loop_header_branch
              %394 = sbr.rel (%p392) target = $region67
            $region64: #{tpu_custom_call.1} parent=59 // loop_body
              %s396 = smul.u32 %s391, 4
              %s397 = smul.addr %s396, 4
              %s398 = scalar_lea.vmem %s6, %s397
              %v399 = vld [vmem:[%s398] sm:$0xf]
              %v400 = vld [vmem:[%s398 + $0x4] sm:$0xf]
              %v401 = vld [vmem:[%s398 + $0x8] sm:$0xf]
              %v402 = vld [vmem:[%s398 + $0xc] sm:$0xf]
              %s403 = scalar_lea.vmem %s7, %s391
              %v404 = vld [vmem:[%s403] sm:$0x1]
              %v406 = vlaneseq
              %v407 = vshrl.u32 %v406, 7
              %v408 = vsub.s32 0, %v407
              %v409 = vrot.slane %v404, %v408
              %v415 = vunpack.c.l.b16 %v399
              %v416 = vunpack.c.l.b16 %v400
              %v417 = vunpack.c.l.b16 %v401
              %v418 = vunpack.c.l.b16 %v402
              %v419 = vpack.c.b16 %v416, %v415
              %v420 = vpack.c.b16 %v418, %v417
              %vm423 = vcmask 261120
              %v425 = vsel %vm423, %v389, 0
              %427 = vmatprep.subr.bf16.mxu0 0
              %428 = vmatpush1.bf16.msra.mxu0 %v419
              %429 = vmatprep.subr.bf16.mxu0 0
              %430 = vmatpush1.bf16.msra.mxu0 %v420
              %431 = vmatprep.subr.bf16.mxu0 0
              %432 = vmatpush1.bf16.msra.mxu0 0
              %433 = vmatprep.subr.bf16.mxu0 0
              %434 = vmatpush1.bf16.msra.mxu0 0
              %435 = vmatprep.subr.bf16.mxu0 0
              %436 = vmatpush1.bf16.msra.mxu0 0
              %437 = vmatprep.subr.bf16.mxu0 0
              %438 = vmatpush1.bf16.msra.mxu0 0
              %439 = vmatprep.subr.bf16.mxu0 0
              %440 = vmatpush1.bf16.msra.mxu0 0
              %441 = vmatprep.subr.bf16.mxu0 0
              %442 = vmatpush1.bf16.msra.mxu0 0
              %443 = vmatprep.subr.bf16.mxu0 0
              %444 = vmatpush1.bf16.msra.mxu0 0
              %445 = vmatprep.subr.bf16.mxu0 0
              %446 = vmatpush1.bf16.msra.mxu0 0
              %447 = vmatprep.subr.bf16.mxu0 0
              %448 = vmatpush1.bf16.msra.mxu0 0
              %449 = vmatprep.subr.bf16.mxu0 0
              %450 = vmatpush1.bf16.msra.mxu0 0
              %451 = vmatprep.subr.bf16.mxu0 0
              %452 = vmatpush1.bf16.msra.mxu0 0
              %453 = vmatprep.subr.bf16.mxu0 0
              %454 = vmatpush1.bf16.msra.mxu0 0
              %455 = vmatprep.subr.bf16.mxu0 0
              %456 = vmatpush1.bf16.msra.mxu0 0
              %457 = vmatprep.subr.bf16.mxu0 0
              %458 = vmatpush1.bf16.msra.mxu0 0
              %459 = vmatprep.mubr.bf16.mxu0 0
              %460 = vmatmul.mubr.bf16.gmra.mrb[0].mxu0 %v425
              %v461 = vpop.f32.mrb[0].mxu0
              %v462 = vadd.f32 %v409, %v461
              %v463 = vpop.f32.mrb[0].mxu0
              %v464 = vpop.f32.mrb[0].mxu0
              %v465 = vpop.f32.mrb[0].mxu0
              %466 = vdwg.mxu0
              %v467 = vpack.c.bf16 %v462, %v462
              %s468 = smul.addr %s391, 4
              %s469 = scalar_lea.vmem [#allocation2], %s468
              %vm470 = vcmask 60416
              %471 = vst.msk [vmem:[%s469] sm:$0xf] %vm470, %v467
            $region65: #{tpu_custom_call.1} parent=59 // loop_footer
              %s395 = sadd.s32 1, %s391
            $region66: #{tpu_custom_call.1} parent=59 // loop_footer_branch
              %390 = sbr.rel target = $region62
            $region67: #{tpu_custom_call.1} parent=59 // loop_exit
              _
          $region60: #{tpu_custom_call.1} parent=55 // pred_fallthru
            _
          %v472 = vld [vmem:[%s369] sm:$0xf]
          %v473 = vld [vmem:[%s376] sm:$0x1]
          %v474 = vsub.f32 1.0, %v473
          %v475 = vmul.f32 %v474, -1e+30
          %vm476 = vcmask 64512
          %477 = vst.msk [vmem:[#allocation3] sm:$0xff] %vm476, 0.0
          loop: start=0, step=1, limit=4
          $region68: #{tpu_custom_call.1} parent=55 // loop_pre_header
            _
          $region69: #{tpu_custom_call.1} parent=55 // loop_header
            %s479 = sphi 0, %s483
            %p480 = scmp.ge.s32.totalorder %s479, 4
          $region70: #{tpu_custom_call.1} parent=55 // loop_header_branch
            %482 = sbr.rel (%p480) target = $region74
          $region71: #{tpu_custom_call.1} parent=55 // loop_body
            %s484 = smul.u32 %s479, 4
            %s485 = smul.addr %s484, 4
            %s486 = scalar_lea.vmem %s4, %s485
            %v487 = vld [vmem:[%s486] sm:$0xf]
            %v488 = vld [vmem:[%s486 + $0x4] sm:$0xf]
            %v489 = vld [vmem:[%s486 + $0x8] sm:$0xf]
            %v490 = vld [vmem:[%s486 + $0xc] sm:$0xf]
            %s491 = scalar_lea.vmem %s5, %s479
            %v492 = vld [vmem:[%s491] sm:$0x1]
            %v494 = vlaneseq
            %v495 = vshrl.u32 %v494, 7
            %v496 = vsub.s32 0, %v495
            %v497 = vrot.slane %v492, %v496
            %v503 = vunpack.c.l.b16 %v487
            %v504 = vunpack.c.l.b16 %v488
            %v505 = vunpack.c.l.b16 %v489
            %v506 = vunpack.c.l.b16 %v490
            %v507 = vpack.c.b16 %v504, %v503
            %v508 = vpack.c.b16 %v506, %v505
            %vm511 = vcmask 261120
            %v513 = vsel %vm511, %v472, 0
            %515 = vmatprep.subr.bf16.mxu0 0
            %516 = vmatpush1.bf16.msra.mxu0 %v507
            %517 = vmatprep.subr.bf16.mxu0 0
            %518 = vmatpush1.bf16.msra.mxu0 %v508
            %519 = vmatprep.subr.bf16.mxu0 0
            %520 = vmatpush1.bf16.msra.mxu0 0
            %521 = vmatprep.subr.bf16.mxu0 0
            %522 = vmatpush1.bf16.msra.mxu0 0
            %523 = vmatprep.subr.bf16.mxu0 0
            %524 = vmatpush1.bf16.msra.mxu0 0
            %525 = vmatprep.subr.bf16.mxu0 0
            %526 = vmatpush1.bf16.msra.mxu0 0
            %527 = vmatprep.subr.bf16.mxu0 0
            %528 = vmatpush1.bf16.msra.mxu0 0
            %529 = vmatprep.subr.bf16.mxu0 0
            %530 = vmatpush1.bf16.msra.mxu0 0
            %531 = vmatprep.subr.bf16.mxu0 0
            %532 = vmatpush1.bf16.msra.mxu0 0
            %533 = vmatprep.subr.bf16.mxu0 0
            %534 = vmatpush1.bf16.msra.mxu0 0
            %535 = vmatprep.subr.bf16.mxu0 0
            %536 = vmatpush1.bf16.msra.mxu0 0
            %537 = vmatprep.subr.bf16.mxu0 0
            %538 = vmatpush1.bf16.msra.mxu0 0
            %539 = vmatprep.subr.bf16.mxu0 0
            %540 = vmatpush1.bf16.msra.mxu0 0
            %541 = vmatprep.subr.bf16.mxu0 0
            %542 = vmatpush1.bf16.msra.mxu0 0
            %543 = vmatprep.subr.bf16.mxu0 0
            %544 = vmatpush1.bf16.msra.mxu0 0
            %545 = vmatprep.subr.bf16.mxu0 0
            %546 = vmatpush1.bf16.msra.mxu0 0
            %547 = vmatprep.mubr.bf16.mxu0 0
            %548 = vmatmul.mubr.bf16.gmra.mrb[0].mxu0 %v513
            %v549 = vpop.f32.mrb[0].mxu0
            %v550 = vadd.f32 %v497, %v549
            %v551 = vpop.f32.mrb[0].mxu0
            %v552 = vpop.f32.mrb[0].mxu0
            %v553 = vpop.f32.mrb[0].mxu0
            %554 = vdwg.mxu0
            %v555 = vpack.c.bf16 %v550, %v550
            %s556 = smul.addr %s479, 4
            %s557 = scalar_lea.vmem [#allocation2], %s556
            %v558 = vld [vmem:[%s557] sm:$0xf]
            %v560 = vsel %vm476, %v555, 0
            %v563 = vsel %vm476, %v558, 0
            %565 = vmatprep.subr.bf16.mxu0 0
            %566 = vmatpush1.bf16.xpose.msra.mxu0 %v563
            %567 = vmatprep.subr.bf16.mxu0 0
            %568 = vmatpush1.bf16.xpose.msra.mxu0 0
            %569 = vmatprep.subr.bf16.mxu0 0
            %570 = vmatpush1.bf16.xpose.msra.mxu0 0
            %571 = vmatprep.subr.bf16.mxu0 0
            %572 = vmatpush1.bf16.xpose.msra.mxu0 0
            %573 = vmatprep.subr.bf16.mxu0 0
            %574 = vmatpush1.bf16.xpose.msra.mxu0 0
            %575 = vmatprep.subr.bf16.mxu0 0
            %576 = vmatpush1.bf16.xpose.msra.mxu0 0
            %577 = vmatprep.subr.bf16.mxu0 0
            %578 = vmatpush1.bf16.xpose.msra.mxu0 0
            %579 = vmatprep.subr.bf16.mxu0 0
            %580 = vmatpush1.bf16.xpose.msra.mxu0 0
            %581 = vmatprep.subr.bf16.mxu0 0
            %582 = vmatpush1.bf16.xpose.msra.mxu0 0
            %583 = vmatprep.subr.bf16.mxu0 0
            %584 = vmatpush1.bf16.xpose.msra.mxu0 0
            %585 = vmatprep.subr.bf16.mxu0 0
            %586 = vmatpush1.bf16.xpose.msra.mxu0 0
            %587 = vmatprep.subr.bf16.mxu0 0
            %588 = vmatpush1.bf16.xpose.msra.mxu0 0
            %589 = vmatprep.subr.bf16.mxu0 0
            %590 = vmatpush1.bf16.xpose.msra.mxu0 0
            %591 = vmatprep.subr.bf16.mxu0 0
            %592 = vmatpush1.bf16.xpose.msra.mxu0 0
            %593 = vmatprep.subr.bf16.mxu0 0
            %594 = vmatpush1.bf16.xpose.msra.mxu0 0
            %595 = vmatprep.subr.bf16.mxu0 0
            %596 = vmatpush1.bf16.xpose.msra.mxu0 0
            %597 = vmatprep.mubr.bf16.mxu0 0
            %598 = vmatmul.mubr.bf16.gmra.mrb[0].mxu0 %v560
            %v599 = vpop.f32.mrb[0].mxu0
            %v600 = vadd.f32 0.0, %v599
            %v601 = vpop.f32.mrb[0].mxu0
            %v602 = vpop.f32.mrb[0].mxu0
            %v603 = vpop.f32.mrb[0].mxu0
            %604 = vdwg.mxu0
            %v605 = vmul.f32 %v600, 0.35355338
            %v607 = vlaneseq
            %v608 = vshrl.u32 %v607, 7
            %v609 = vsub.s32 0, %v608
            %v610 = vrot.slane %v475, %v609
            %v612 = vadd.f32 %v605, %v610
            %v613 = vld [vmem:[#allocation3] sm:$0xff]
            %v614 = vsel %vm476, %v612, -inf
            %615 = vmax.xlane.f32.xlu0 %v614
            %v616 = vpop.xlane.xlu0 %615
            %v617 = vsub.f32 %v612, %v616
            %v618 = vmul.f32 %v617, 1.442695
            %v619 = vpow.pop %v618
            %v620 = vsel %vm476, %v619, 0.0
            %621 = vadd.xlane.f32.xlu0 %v620
            %v622 = vpop.xlane.xlu0 %621
            %v623 = vrcp.pop %v622
            %v624 = vmul.f32 %v619, %v623
            %v625 = vadd.f32 %v613, %v624
            %626 = vst.msk [vmem:[#allocation3] sm:$0xff] %vm476, %v625
          $region72: #{tpu_custom_call.1} parent=55 // loop_footer
            %s483 = sadd.s32 1, %s479
          $region73: #{tpu_custom_call.1} parent=55 // loop_footer_branch
            %478 = sbr.rel target = $region69
          $region74: #{tpu_custom_call.1} parent=55 // loop_exit
            _
          %v627 = vld [vmem:[#allocation3] sm:$0xff]
          %v628 = vmul.f32 %v627, 0.25
          %v629 = vpack.c.bf16 %v628, %v628
          %vm630 = vcmask 60416
          %631 = vst.msk [vmem:[#allocation4] sm:$0xf] %vm630, %v629
        $region56: #{tpu_custom_call.1} parent=51 // pred_fallthru
          _
        %v632 = vld [vmem:[%s379] sm:$0x1]
        %s633 = smul.u32 %s29, 128
        %v634 = vstv %s633
        %v635 = vsub.s32 %v632, %v634
        %v636 = vlaneseq
        %v637 = vshrl.u32 %v636, 7
        %v638 = vadd.s32 %v637, 8
        %v639 = vadd.s32 %v637, 16
        %v640 = vadd.s32 %v637, 24
        %v641 = vadd.s32 %v637, 32
        %v642 = vadd.s32 %v637, 40
        %v643 = vadd.s32 %v637, 48
        %v644 = vadd.s32 %v637, 56
        %v645 = vadd.s32 %v637, 64
        %v646 = vadd.s32 %v637, 72
        %v647 = vadd.s32 %v637, 80
        %v648 = vadd.s32 %v637, 88
        %v649 = vadd.s32 %v637, 96
        %v650 = vadd.s32 %v637, 104
        %v651 = vadd.s32 %v637, 112
        %v652 = vadd.s32 %v637, 120
        %v653 = vlaneseq
        %v654 = vshrl.u32 %v653, 7
        %v655 = vsub.s32 0, %v654
        %v656 = vrot.slane %v635, %v655
        %vm657 = vcmp.eq.s32.totalorder %v637, %v656
        %vm658 = vcmp.eq.s32.totalorder %v638, %v656
        %vm659 = vcmp.eq.s32.totalorder %v639, %v656
        %vm660 = vcmp.eq.s32.totalorder %v640, %v656
        %vm661 = vcmp.eq.s32.totalorder %v641, %v656
        %vm662 = vcmp.eq.s32.totalorder %v642, %v656
        %vm663 = vcmp.eq.s32.totalorder %v643, %v656
        %vm664 = vcmp.eq.s32.totalorder %v644, %v656
        %vm665 = vcmp.eq.s32.totalorder %v645, %v656
        %vm666 = vcmp.eq.s32.totalorder %v646, %v656
        %vm667 = vcmp.eq.s32.totalorder %v647, %v656
        %vm668 = vcmp.eq.s32.totalorder %v648, %v656
        %vm669 = vcmp.eq.s32.totalorder %v649, %v656
        %vm670 = vcmp.eq.s32.totalorder %v650, %v656
        %vm671 = vcmp.eq.s32.totalorder %v651, %v656
        %vm672 = vcmp.eq.s32.totalorder %v652, %v656
        %v673 = vsel %vm657, 1, 0
        %v674 = vsel %vm658, 1, 0
        %v675 = vsel %vm659, 1, 0
        %v676 = vsel %vm660, 1, 0
        %v677 = vsel %vm661, 1, 0
        %v678 = vsel %vm662, 1, 0
        %v679 = vsel %vm663, 1, 0
        %v680 = vsel %vm664, 1, 0
        %v681 = vsel %vm665, 1, 0
        %v682 = vsel %vm666, 1, 0
        %v683 = vsel %vm667, 1, 0
        %v684 = vsel %vm668, 1, 0
        %v685 = vsel %vm669, 1, 0
        %v686 = vsel %vm670, 1, 0
        %v687 = vsel %vm671, 1, 0
        %v688 = vsel %vm672, 1, 0
        %v689 = vcvt.s32.f32 %v673
        %v690 = vcvt.s32.f32 %v674
        %v691 = vcvt.s32.f32 %v675
        %v692 = vcvt.s32.f32 %v676
        %v693 = vcvt.s32.f32 %v677
        %v694 = vcvt.s32.f32 %v678
        %v695 = vcvt.s32.f32 %v679
        %v696 = vcvt.s32.f32 %v680
        %v697 = vcvt.s32.f32 %v681
        %v698 = vcvt.s32.f32 %v682
        %v699 = vcvt.s32.f32 %v683
        %v700 = vcvt.s32.f32 %v684
        %v701 = vcvt.s32.f32 %v685
        %v702 = vcvt.s32.f32 %v686
        %v703 = vcvt.s32.f32 %v687
        %v704 = vcvt.s32.f32 %v688
        %v705 = vpack.c.bf16 %v690, %v689
        %v706 = vpack.c.bf16 %v692, %v691
        %v707 = vpack.c.bf16 %v694, %v693
        %v708 = vpack.c.bf16 %v696, %v695
        %v709 = vpack.c.bf16 %v698, %v697
        %v710 = vpack.c.bf16 %v700, %v699
        %v711 = vpack.c.bf16 %v702, %v701
        %v712 = vpack.c.bf16 %v704, %v703
        %v713 = vld [vmem:[#allocation4] sm:$0xf]
        %vm714 = vcmask 64512
        %v716 = vsel %vm714, %v713, 0
        %v719 = vsel %vm714, %v705, 0
        %v722 = vsel %vm714, %v706, 0
        %v725 = vsel %vm714, %v707, 0
        %v728 = vsel %vm714, %v708, 0
        %v731 = vsel %vm714, %v709, 0
        %v734 = vsel %vm714, %v710, 0
        %v737 = vsel %vm714, %v711, 0
        %v740 = vsel %vm714, %v712, 0
        %742 = vmatprep.subr.bf16.mxu0 0
        %743 = vmatpush1.bf16.xpose.msra.mxu0 %v719
        %744 = vmatprep.subr.bf16.mxu0 0
        %745 = vmatpush1.bf16.xpose.msra.mxu0 %v722
        %746 = vmatprep.subr.bf16.mxu0 0
        %747 = vmatpush1.bf16.xpose.msra.mxu0 %v725
        %748 = vmatprep.subr.bf16.mxu0 0
        %749 = vmatpush1.bf16.xpose.msra.mxu0 %v728
        %750 = vmatprep.subr.bf16.mxu0 0
        %751 = vmatpush1.bf16.xpose.msra.mxu0 %v731
        %752 = vmatprep.subr.bf16.mxu0 0
        %753 = vmatpush1.bf16.xpose.msra.mxu0 %v734
        %754 = vmatprep.subr.bf16.mxu0 0
        %755 = vmatpush1.bf16.xpose.msra.mxu0 %v737
        %756 = vmatprep.subr.bf16.mxu0 0
        %757 = vmatpush1.bf16.xpose.msra.mxu0 %v740
        %758 = vmatprep.subr.bf16.mxu0 0
        %759 = vmatpush1.bf16.xpose.msra.mxu0 0
        %760 = vmatprep.subr.bf16.mxu0 0
        %761 = vmatpush1.bf16.xpose.msra.mxu0 0
        %762 = vmatprep.subr.bf16.mxu0 0
        %763 = vmatpush1.bf16.xpose.msra.mxu0 0
        %764 = vmatprep.subr.bf16.mxu0 0
        %765 = vmatpush1.bf16.xpose.msra.mxu0 0
        %766 = vmatprep.subr.bf16.mxu0 0
        %767 = vmatpush1.bf16.xpose.msra.mxu0 0
        %768 = vmatprep.subr.bf16.mxu0 0
        %769 = vmatpush1.bf16.xpose.msra.mxu0 0
        %770 = vmatprep.subr.bf16.mxu0 0
        %771 = vmatpush1.bf16.xpose.msra.mxu0 0
        %772 = vmatprep.subr.bf16.mxu0 0
        %773 = vmatpush1.bf16.xpose.msra.mxu0 0
        %774 = vmatprep.mubr.bf16.mxu0 0
        %775 = vmatmul.mubr.bf16.gmra.mrb[0].mxu0 %v716
        %v776 = vpop.f32.mrb[0].mxu0
        %v777 = vadd.f32 0.0, %v776
        %v778 = vpop.f32.mrb[0].mxu0
        %v779 = vpop.f32.mrb[0].mxu0
        %v780 = vpop.f32.mrb[0].mxu0
        %781 = vdwg.mxu0
        %782 = vst [vmem:[%s362] sm:$0xff] %v777
        %s783 = sand.u32 %s243, 1
        %s784 = scalar_lea.sflag [#allocation6], %s783
        %s785 = sand.u32 %s243, 1
        %s786 = smul.addr %s785, 8
        %s787 = scalar_lea.vmem [#allocation5], %s786
        // Predicated region
        $region75: #{tpu_custom_call.1} parent=51 // pred_check
          %p788 = pneg %p253
        $region76: #{tpu_custom_call.1} parent=51 // pred_check_branch
          %790 = sbr.rel (%p788) target = $region78
        $region77: #{tpu_custom_call.1} parent=51 // pred_region
          %s792 = ssub.s32 128, 128
          %793 = vsyncadd %s784, %s792
          %s794 = sadd.s32 %s29, %s28
          %s795 = sadd.s32 %s794, %s27
          %s796 = smul.addr %s795, 128
          %s797 = scalar_lea.hbm %s8, %s796
          %s799 = sshll.u32 %s787, 4
          %s800 = int_to_ptr.vmem [resolvable:$true] %s799
          %802 = dma.vmem_to_hbm [thread:$0]  %s800, 128, %s797, %s784
        $region78: #{tpu_custom_call.1} parent=51 // pred_fallthru
          _
      $region52: #{tpu_custom_call.1} parent=5 // pred_fallthru
        _
      %p803 = scmp.le.s32.totalorder 2, %s17
      // Predicated region
      $region79: #{tpu_custom_call.1} parent=5 // pred_check
        %p804 = pneg %p803
      $region80: #{tpu_custom_call.1} parent=5 // pred_check_branch
        %806 = sbr.rel (%p804) target = $region82
      $region81: #{tpu_custom_call.1} parent=5 // pred_region
        %s807 = ssub.s32 %s17, 2
        // Predicated region
        $region83: #{tpu_custom_call.1} parent=81 // pred_check
          %p808 = pneg %p259
        $region84: #{tpu_custom_call.1} parent=81 // pred_check_branch
          %810 = sbr.rel (%p808) target = $region86
        $region85: #{tpu_custom_call.1} parent=81 // pred_region
          %s811 = sand.u32 %s244, 1
          %s812 = scalar_lea.sflag [#allocation6], %s811
          %s813 = sand.u32 %s244, 1
          %s814 = smul.addr %s813, 8
          %s815 = scalar_lea.vmem [#allocation5], %s814
          %816 = dma.done %s812, 128
        $region86: #{tpu_custom_call.1} parent=81 // pred_fallthru
          _
      $region82: #{tpu_custom_call.1} parent=5 // pred_fallthru
        _
    $region6: #{tpu_custom_call.1} parent=1 // loop_footer
      %s21 = sadd.s32 1, %s17
    $region7: #{tpu_custom_call.1} parent=1 // loop_footer_branch
      %16 = sbr.rel target = $region3
    $region8: #{tpu_custom_call.1} parent=1 // loop_exit
      _
    %817 = vsyncpa [#allocation6], 1
    %s818 = scalar_lea.sflag [#allocation6], 1
    %819 = vsyncpa %s818, 1

</llo_original>
